<compile_context>
chip_gen: v7x
topology: tpu7x:2x2x1
jax: 0.10.0
libtpu: 0.0.40
codegen_flags: <defaults>
</compile_context>

<pallas_src>
import functools

import jax
import jax.numpy as jnp
from jax.experimental import pallas as pl
from jax.experimental.pallas import tpu as pltpu


def _fused_logistic_kernel(layer_num, *refs):
    """refs = (x1, x2, w0a, w0b, b0, w1, b1, ..., w_{L-1}, b_{L-1}, out).

    Weights are pre-transposed to (in, out); biases are (1, out).
    """
    x1_ref, x2_ref = refs[0], refs[1]
    o_ref = refs[-1]

    # Layer 0: concat(x1, x2) @ W0 + b0  ==  x1 @ W0[:C] + x2 @ W0[C:] + b0
    x = jnp.dot(x1_ref[...], refs[2][...], preferred_element_type=jnp.float32)
    x = x + jnp.dot(x2_ref[...], refs[3][...],
                    preferred_element_type=jnp.float32)
    x = x + refs[4][...].astype(jnp.float32)

    # Remaining layers, fully unrolled at trace time; activations stay on-chip.
    idx = 5
    for _ in range(1, layer_num):
        w_ref, b_ref = refs[idx], refs[idx + 1]
        idx += 2
        x = jnp.dot(x.astype(w_ref.dtype), w_ref[...],
                    preferred_element_type=jnp.float32)
        x = x + b_ref[...].astype(jnp.float32)

    o_ref[...] = x.astype(o_ref.dtype)


def simple_logistic_forward(x1, x2, kparams):
    """x1, x2: (B, C). kparams: flat tuple from prepare_params. -> (B, C)."""
    layer_num = (len(kparams) - 1) // 2
    B = x1.shape[0]
    out_features = kparams[-1].shape[-1]
    n_in = 2 + len(kparams)
    kernel = functools.partial(_fused_logistic_kernel, layer_num)
    return pl.pallas_call(
        kernel,
        out_shape=jax.ShapeDtypeStruct((B, out_features), x1.dtype),
        in_specs=[pl.BlockSpec(memory_space=pltpu.MemorySpace.VMEM)] * n_in,
        out_specs=pl.BlockSpec(memory_space=pltpu.MemorySpace.VMEM),
    )(x1, x2, *kparams)


def init_params(key, class_num, layer_num, dtype=jnp.float32):
    """Deterministic init mimicking nn.Linear shapes: W (out, in), b (out,)."""
    input_size = class_num * 2
    output_size = class_num
    params = []
    for li in range(layer_num):
        in_f = input_size
        out_f = input_size if li < layer_num - 1 else output_size
        key, kw, kb = jax.random.split(key, 3)
        bound = 1.0 / jnp.sqrt(in_f)
        w = jax.random.uniform(kw, (out_f, in_f), dtype, -bound, bound)
        b = jax.random.uniform(kb, (out_f,), dtype, -bound, bound)
        params.append((w, b))
    return params


def prepare_params(params, class_num):
    """One-time conversion to kernel layout.

    Layer 0 weight (out, 2C) -> transposed (2C, out) and split row-wise into
    the x1 half (C, out) and x2 half (C, out). Remaining weights -> (in, out).
    Biases -> (1, out). Done once, so no per-forward transpose ops.
    """
    w0, b0 = params[0]
    w0_t = w0.T  # (in=2C, out)
    kparams = [w0_t[:class_num, :], w0_t[class_num:, :], b0.reshape(1, -1)]
    for w, b in params[1:]:
        kparams.append(w.T)            # (in, out)
        kparams.append(b.reshape(1, -1))
    return tuple(kparams)


if __name__ == "__main__":
    class_num = 16
    layer_num = 3
    batch = 8

    key = jax.random.PRNGKey(0)
    kp, k1, k2 = jax.random.split(key, 3)
    params = init_params(kp, class_num, layer_num)
    kparams = prepare_params(params, class_num)

    x1 = jax.random.normal(k1, (batch, class_num), jnp.float32)
    x2 = jax.random.normal(k2, (batch, class_num), jnp.float32)

    out = simple_logistic_forward(x1, x2, kparams)
    jax.block_until_ready(out)

    # Reference check in plain JAX (matches the PyTorch forward exactly).
    xr = jnp.concatenate([x1, x2], axis=-1)
    for w, b in params:
        xr = xr @ w.T + b
    assert out.shape == (batch, class_num)
    assert jnp.allclose(out, xr, atol=1e-4), "mismatch vs reference"

    print("KERNEL_OK")
</pallas_src>

<mosaic_0001>
module attributes {stable_mosaic.version = 11 : i64} {
  func.func @_fused_logistic_kernel(%arg0: memref<8x16xf32, #tpu.memory_space<vmem>>, %arg1: memref<8x16xf32, #tpu.memory_space<vmem>>, %arg2: memref<16x32xf32, #tpu.memory_space<vmem>>, %arg3: memref<16x32xf32, #tpu.memory_space<vmem>>, %arg4: memref<1x32xf32, #tpu.memory_space<vmem>>, %arg5: memref<32x32xf32, #tpu.memory_space<vmem>>, %arg6: memref<1x32xf32, #tpu.memory_space<vmem>>, %arg7: memref<32x16xf32, #tpu.memory_space<vmem>>, %arg8: memref<1x16xf32, #tpu.memory_space<vmem>>, %arg9: memref<8x16xf32, #tpu.memory_space<vmem>>) attributes {dimension_semantics = [], scalar_prefetch = 0 : i64, scratch_operands = 0 : i64, tpu.core_type = #tpu.core_type<tc>} {
    %c0 = arith.constant 0 : index
    %c0_0 = arith.constant 0 : index
    %0 = vector.load %arg0[%c0, %c0_0] : memref<8x16xf32, #tpu.memory_space<vmem>>, vector<8x16xf32>
    %c0_1 = arith.constant 0 : index
    %c0_2 = arith.constant 0 : index
    %1 = vector.load %arg2[%c0_1, %c0_2] : memref<16x32xf32, #tpu.memory_space<vmem>>, vector<16x32xf32>
    %cst = arith.constant dense<0.000000e+00> : vector<8x32xf32>
    %2 = tpu.matmul %0, %1, %cst {dimension_numbers = #tpu.dot_dimension_numbers<[1], [0], [0], [1], [0, 0, 1, 1], [], []>} : vector<8x16xf32>, vector<16x32xf32>, vector<8x32xf32> -> vector<8x32xf32>
    %c0_3 = arith.constant 0 : index
    %c0_4 = arith.constant 0 : index
    %3 = vector.load %arg1[%c0_3, %c0_4] : memref<8x16xf32, #tpu.memory_space<vmem>>, vector<8x16xf32>
    %c0_5 = arith.constant 0 : index
    %c0_6 = arith.constant 0 : index
    %4 = vector.load %arg3[%c0_5, %c0_6] : memref<16x32xf32, #tpu.memory_space<vmem>>, vector<16x32xf32>
    %cst_7 = arith.constant dense<0.000000e+00> : vector<8x32xf32>
    %5 = tpu.matmul %3, %4, %cst_7 {dimension_numbers = #tpu.dot_dimension_numbers<[1], [0], [0], [1], [0, 0, 1, 1], [], []>} : vector<8x16xf32>, vector<16x32xf32>, vector<8x32xf32> -> vector<8x32xf32>
    %6 = arith.addf %2, %5 : vector<8x32xf32>
    %c0_8 = arith.constant 0 : index
    %c0_9 = arith.constant 0 : index
    %7 = vector.load %arg4[%c0_8, %c0_9] : memref<1x32xf32, #tpu.memory_space<vmem>>, vector<1x32xf32>
    %8 = vector.broadcast %7 : vector<1x32xf32> to vector<8x32xf32>
    %9 = arith.addf %6, %8 : vector<8x32xf32>
    %c0_10 = arith.constant 0 : index
    %c0_11 = arith.constant 0 : index
    %10 = vector.load %arg5[%c0_10, %c0_11] : memref<32x32xf32, #tpu.memory_space<vmem>>, vector<32x32xf32>
    %cst_12 = arith.constant dense<0.000000e+00> : vector<8x32xf32>
    %11 = tpu.matmul %9, %10, %cst_12 {dimension_numbers = #tpu.dot_dimension_numbers<[1], [0], [0], [1], [0, 0, 1, 1], [], []>} : vector<8x32xf32>, vector<32x32xf32>, vector<8x32xf32> -> vector<8x32xf32>
    %c0_13 = arith.constant 0 : index
    %c0_14 = arith.constant 0 : index
    %12 = vector.load %arg6[%c0_13, %c0_14] : memref<1x32xf32, #tpu.memory_space<vmem>>, vector<1x32xf32>
    %13 = vector.broadcast %12 : vector<1x32xf32> to vector<8x32xf32>
    %14 = arith.addf %11, %13 : vector<8x32xf32>
    %c0_15 = arith.constant 0 : index
    %c0_16 = arith.constant 0 : index
    %15 = vector.load %arg7[%c0_15, %c0_16] : memref<32x16xf32, #tpu.memory_space<vmem>>, vector<32x16xf32>
    %cst_17 = arith.constant dense<0.000000e+00> : vector<8x16xf32>
    %16 = tpu.matmul %14, %15, %cst_17 {dimension_numbers = #tpu.dot_dimension_numbers<[1], [0], [0], [1], [0, 0, 1, 1], [], []>} : vector<8x32xf32>, vector<32x16xf32>, vector<8x16xf32> -> vector<8x16xf32>
    %c0_18 = arith.constant 0 : index
    %c0_19 = arith.constant 0 : index
    %17 = vector.load %arg8[%c0_18, %c0_19] : memref<1x16xf32, #tpu.memory_space<vmem>>, vector<1x16xf32>
    %18 = vector.broadcast %17 : vector<1x16xf32> to vector<8x16xf32>
    %19 = arith.addf %16, %18 : vector<8x16xf32>
    %c0_20 = arith.constant 0 : index
    %c0_21 = arith.constant 0 : index
    %20 = vector.load %arg9[%c0_20, %c0_21] : memref<8x16xf32, #tpu.memory_space<vmem>>, vector<8x16xf32>
    tpu.vector_store %arg9[%c0_20, %c0_21], %19 {strides = array<i32>} : memref<8x16xf32, #tpu.memory_space<vmem>>, vector<8x16xf32>,
    return
  }
}

</mosaic_0001>

<llo_original>
// kernel: tpu_custom_call.1
$region0: #{tpu_custom_call.1}
  #allocation0 [shape = 'u32[]', space=smem, size = 0x4, offset = 0x4, fixed_abs, tag = 'smem constant byte address 0x4 - core index']
  #allocation1 [shape = 'u32[144,128]{1,0:T(1,128)}', space=vmem, size = 0x12000, scoped, tag = 'internal scratch']
  %s0 = inlined_call_operand.vmem [shape: f32[8,16], index: 0, kind: input, shape index: {}]
  %s1 = inlined_call_operand.hbm [shape: f32[8,16], index: 1, kind: input, shape index: {}]
  %s2 = inlined_call_operand.vmem [shape: f32[16,32], index: 2, kind: input, shape index: {}]
  %s3 = inlined_call_operand.hbm [shape: f32[16,32], index: 3, kind: input, shape index: {}]
  %s4 = inlined_call_operand.vmem [shape: f32[1,32], index: 4, kind: input, shape index: {}]
  %s5 = inlined_call_operand.vmem [shape: f32[32,32], index: 5, kind: input, shape index: {}]
  %s6 = inlined_call_operand.vmem [shape: f32[1,32], index: 6, kind: input, shape index: {}]
  %s7 = inlined_call_operand.vmem [shape: f32[32,16], index: 7, kind: input, shape index: {}]
  %s8 = inlined_call_operand.vmem [shape: f32[1,16], index: 8, kind: input, shape index: {}]
  %s9 = inlined_call_operand.hbm [shape: f32[8,16], index: 9, kind: output, shape index: {}]
  %s10 = sld [smem:[#allocation0]]
  $region54: #{tpu_custom_call.1} parent=0
    _
  %s12 = ssub.s32 1, %s10
  %s13 = scalar_select 0, %s12, %s10
  $region1: #{tpu_custom_call.1} parent=0
    #allocation2 [shape = 'u8[4096]{0}', space=vmem, size = 0x1000, scoped, tag = 'input window, operand 1, single buffered']
    #allocation3 [shape = 's32[1]{0}', space=sflag, size = 0x4, scoped, tag = 'scoped memory for tpu_custom_call.1']
    #allocation4 [shape = 's32[1]{0}', space=sflag, size = 0x4, scoped, tag = 'scoped memory for tpu_custom_call.1']
    #allocation5 [shape = 'u8[8192]{0}', space=vmem, size = 0x2000, scoped, tag = 'input window, operand 3, single buffered']
    #allocation6 [shape = 's32[1]{0}', space=sflag, size = 0x4, scoped, tag = 'scoped memory for tpu_custom_call.1']
    #allocation7 [shape = 'u8[4096]{0}', space=vmem, size = 0x1000, scoped, tag = 'output window, operand 0, single buffered']
    %14 = vsyncpa [#allocation3], 0
    %15 = vsyncpa [#allocation6], 0
    %16 = vsyncpa [#allocation4], 0
    // Predicated region
    $region2: #{tpu_custom_call.1} parent=1 // pred_check
      _
    $region3: #{tpu_custom_call.1} parent=1 // pred_check_branch
      %18 = sbr.rel (0) target = $region5
    $region4: #{tpu_custom_call.1} parent=1 // pred_region
      _
    $region5: #{tpu_custom_call.1} parent=1 // pred_fallthru
      _
    // Predicated region
    $region6: #{tpu_custom_call.1} parent=1 // pred_check
      _
    $region7: #{tpu_custom_call.1} parent=1 // pred_check_branch
      %20 = sbr.rel (0) target = $region9
    $region8: #{tpu_custom_call.1} parent=1 // pred_region
      %s22 = ssub.s32 128, 128
      %23 = vsyncadd [#allocation3], %s22
      %s25 = sshll.u32 [#allocation2], 4
      %s26 = int_to_ptr.vmem [resolvable:$true] %s25
      %28 = dma.hbm_to_vmem [thread:$0]  %s1, 128, %s26, [#allocation3]
    $region9: #{tpu_custom_call.1} parent=1 // pred_fallthru
      _
    // Predicated region
    $region10: #{tpu_custom_call.1} parent=1 // pred_check
      _
    $region11: #{tpu_custom_call.1} parent=1 // pred_check_branch
      %30 = sbr.rel (0) target = $region13
    $region12: #{tpu_custom_call.1} parent=1 // pred_region
      _
    $region13: #{tpu_custom_call.1} parent=1 // pred_fallthru
      _
    // Predicated region
    $region14: #{tpu_custom_call.1} parent=1 // pred_check
      _
    $region15: #{tpu_custom_call.1} parent=1 // pred_check_branch
      %32 = sbr.rel (0) target = $region17
    $region16: #{tpu_custom_call.1} parent=1 // pred_region
      %s34 = ssub.s32 256, 256
      %35 = vsyncadd [#allocation6], %s34
      %s36 = sshll.u32 [#allocation5], 4
      %s37 = int_to_ptr.vmem [resolvable:$true] %s36
      %42 = dma.hbm_to_vmem [thread:$0]  %s3, 256, %s37, [#allocation6], 128, 128, 8
    $region17: #{tpu_custom_call.1} parent=1 // pred_fallthru
      _
    // Predicated region
    $region18: #{tpu_custom_call.1} parent=1 // pred_check
      _
    $region19: #{tpu_custom_call.1} parent=1 // pred_check_branch
      %44 = sbr.rel (0) target = $region21
    $region20: #{tpu_custom_call.1} parent=1 // pred_region
      _
    $region21: #{tpu_custom_call.1} parent=1 // pred_fallthru
      _
    // Predicated region
    $region22: #{tpu_custom_call.1} parent=1 // pred_check
      _
    $region23: #{tpu_custom_call.1} parent=1 // pred_check_branch
      %46 = sbr.rel (0) target = $region25
    $region24: #{tpu_custom_call.1} parent=1 // pred_region
      _
    $region25: #{tpu_custom_call.1} parent=1 // pred_fallthru
      _
    // Predicated region
    $region26: #{tpu_custom_call.1} parent=1 // pred_check
      _
    $region27: #{tpu_custom_call.1} parent=1 // pred_check_branch
      %48 = sbr.rel (0) target = $region29
    $region28: #{tpu_custom_call.1} parent=1 // pred_region
      _
    $region29: #{tpu_custom_call.1} parent=1 // pred_fallthru
      _
    // Predicated region
    $region30: #{tpu_custom_call.1} parent=1 // pred_check
      _
    $region31: #{tpu_custom_call.1} parent=1 // pred_check_branch
      %50 = sbr.rel (0) target = $region33
    $region32: #{tpu_custom_call.1} parent=1 // pred_region
      _
    $region33: #{tpu_custom_call.1} parent=1 // pred_fallthru
      _
    // Predicated region
    $region34: #{tpu_custom_call.1} parent=1 // pred_check
      _
    $region35: #{tpu_custom_call.1} parent=1 // pred_check_branch
      %52 = sbr.rel (0) target = $region37
    $region36: #{tpu_custom_call.1} parent=1 // pred_region
      _
    $region37: #{tpu_custom_call.1} parent=1 // pred_fallthru
      _
    // Predicated region
    $region38: #{tpu_custom_call.1} parent=1 // pred_check
      _
    $region39: #{tpu_custom_call.1} parent=1 // pred_check_branch
      %54 = sbr.rel (0) target = $region41
    $region40: #{tpu_custom_call.1} parent=1 // pred_region
      %55 = dma.done [#allocation3], 128
    $region41: #{tpu_custom_call.1} parent=1 // pred_fallthru
      _
    // Predicated region
    $region42: #{tpu_custom_call.1} parent=1 // pred_check
      _
    $region43: #{tpu_custom_call.1} parent=1 // pred_check_branch
      %57 = sbr.rel (0) target = $region45
    $region44: #{tpu_custom_call.1} parent=1 // pred_region
      %58 = dma.done [#allocation6], 256
    $region45: #{tpu_custom_call.1} parent=1 // pred_fallthru
      _
    %v59 = vld [vmem:[%s0] sm:$0xff]
    %v60 = vld [vmem:[%s2] sm:$0xff]
    %v61 = vld [vmem:[%s2 + $0x8] sm:$0xff]
    %v62 = vld [vmem:[#allocation2] sm:$0xff]
    %v63 = vld [vmem:[#allocation5] sm:$0xff]
    %v64 = vld [vmem:[#allocation5 + $0x8] sm:$0xff]
    %vm65 = vcmask 130048
    %v67 = vsel %vm65, %v62, 0
    %69 = vmatprep.subr.mxu0 0.0
    %70 = vmatpush1.msra.mxu0 %v63
    %71 = vmatprep.subr.mxu0 0.0
    %72 = vmatpush1.msra.mxu0 %v64
    %73 = vmatprep.subr.mxu0 0.0
    %74 = vmatpush1.msra.mxu0 0.0
    %75 = vmatprep.subr.mxu0 0.0
    %76 = vmatpush1.msra.mxu0 0.0
    %77 = vmatprep.subr.mxu0 0.0
    %78 = vmatpush1.msra.mxu0 0.0
    %79 = vmatprep.subr.mxu0 0.0
    %80 = vmatpush1.msra.mxu0 0.0
    %81 = vmatprep.subr.mxu0 0.0
    %82 = vmatpush1.msra.mxu0 0.0
    %83 = vmatprep.subr.mxu0 0.0
    %84 = vmatpush1.msra.mxu0 0.0
    %85 = vmatprep.subr.mxu0 0.0
    %86 = vmatpush1.msra.mxu0 0.0
    %87 = vmatprep.subr.mxu0 0.0
    %88 = vmatpush1.msra.mxu0 0.0
    %89 = vmatprep.subr.mxu0 0.0
    %90 = vmatpush1.msra.mxu0 0.0
    %91 = vmatprep.subr.mxu0 0.0
    %92 = vmatpush1.msra.mxu0 0.0
    %93 = vmatprep.subr.mxu0 0.0
    %94 = vmatpush1.msra.mxu0 0.0
    %95 = vmatprep.subr.mxu0 0.0
    %96 = vmatpush1.msra.mxu0 0.0
    %97 = vmatprep.subr.mxu0 0.0
    %98 = vmatpush1.msra.mxu0 0.0
    %99 = vmatprep.subr.mxu0 0.0
    %100 = vmatpush1.msra.mxu0 0.0
    %101 = vmatprep.subr.mxu0 0.0
    %102 = vmatpush1.msra.mxu0 0.0
    %103 = vmatprep.subr.mxu0 0.0
    %104 = vmatpush1.msra.mxu0 0.0
    %105 = vmatprep.subr.mxu0 0.0
    %106 = vmatpush1.msra.mxu0 0.0
    %107 = vmatprep.subr.mxu0 0.0
    %108 = vmatpush1.msra.mxu0 0.0
    %109 = vmatprep.subr.mxu0 0.0
    %110 = vmatpush1.msra.mxu0 0.0
    %111 = vmatprep.subr.mxu0 0.0
    %112 = vmatpush1.msra.mxu0 0.0
    %113 = vmatprep.subr.mxu0 0.0
    %114 = vmatpush1.msra.mxu0 0.0
    %115 = vmatprep.subr.mxu0 0.0
    %116 = vmatpush1.msra.mxu0 0.0
    %117 = vmatprep.subr.mxu0 0.0
    %118 = vmatpush1.msra.mxu0 0.0
    %119 = vmatprep.subr.mxu0 0.0
    %120 = vmatpush1.msra.mxu0 0.0
    %121 = vmatprep.subr.mxu0 0.0
    %122 = vmatpush1.msra.mxu0 0.0
    %123 = vmatprep.subr.mxu0 0.0
    %124 = vmatpush1.msra.mxu0 0.0
    %125 = vmatprep.subr.mxu0 0.0
    %126 = vmatpush1.msra.mxu0 0.0
    %127 = vmatprep.subr.mxu0 0.0
    %128 = vmatpush1.msra.mxu0 0.0
    %129 = vmatprep.subr.mxu0 0.0
    %130 = vmatpush1.msra.mxu0 0.0
    %131 = vmatprep.subr.mxu0 0.0
    %132 = vmatpush1.msra.mxu0 0.0
    %133 = vmatprep.mubr.f32.mxu0 0.0
    %134 = vmatmul.mubr.f32.gmra.mrb[0].mxu0 %v67
    %v135 = vpop.f32.mrb[0].mxu0
    %v136 = vadd.f32 0.0, %v135
    %v137 = vpop.f32.mrb[0].mxu0
    %138 = vdwg.mxu0
    %v140 = vsel %vm65, %v59, 0
    %142 = vmatprep.subr.mxu0 0.0
    %143 = vmatpush1.msra.mxu0 %v60
    %144 = vmatprep.subr.mxu0 0.0
    %145 = vmatpush1.msra.mxu0 %v61
    %146 = vmatprep.subr.mxu0 0.0
    %147 = vmatpush1.msra.mxu0 0.0
    %148 = vmatprep.subr.mxu0 0.0
    %149 = vmatpush1.msra.mxu0 0.0
    %150 = vmatprep.subr.mxu0 0.0
    %151 = vmatpush1.msra.mxu0 0.0
    %152 = vmatprep.subr.mxu0 0.0
    %153 = vmatpush1.msra.mxu0 0.0
    %154 = vmatprep.subr.mxu0 0.0
    %155 = vmatpush1.msra.mxu0 0.0
    %156 = vmatprep.subr.mxu0 0.0
    %157 = vmatpush1.msra.mxu0 0.0
    %158 = vmatprep.subr.mxu0 0.0
    %159 = vmatpush1.msra.mxu0 0.0
    %160 = vmatprep.subr.mxu0 0.0
    %161 = vmatpush1.msra.mxu0 0.0
    %162 = vmatprep.subr.mxu0 0.0
    %163 = vmatpush1.msra.mxu0 0.0
    %164 = vmatprep.subr.mxu0 0.0
    %165 = vmatpush1.msra.mxu0 0.0
    %166 = vmatprep.subr.mxu0 0.0
    %167 = vmatpush1.msra.mxu0 0.0
    %168 = vmatprep.subr.mxu0 0.0
    %169 = vmatpush1.msra.mxu0 0.0
    %170 = vmatprep.subr.mxu0 0.0
    %171 = vmatpush1.msra.mxu0 0.0
    %172 = vmatprep.subr.mxu0 0.0
    %173 = vmatpush1.msra.mxu0 0.0
    %174 = vmatprep.subr.mxu0 0.0
    %175 = vmatpush1.msra.mxu0 0.0
    %176 = vmatprep.subr.mxu0 0.0
    %177 = vmatpush1.msra.mxu0 0.0
    %178 = vmatprep.subr.mxu0 0.0
    %179 = vmatpush1.msra.mxu0 0.0
    %180 = vmatprep.subr.mxu0 0.0
    %181 = vmatpush1.msra.mxu0 0.0
    %182 = vmatprep.subr.mxu0 0.0
    %183 = vmatpush1.msra.mxu0 0.0
    %184 = vmatprep.subr.mxu0 0.0
    %185 = vmatpush1.msra.mxu0 0.0
    %186 = vmatprep.subr.mxu0 0.0
    %187 = vmatpush1.msra.mxu0 0.0
    %188 = vmatprep.subr.mxu0 0.0
    %189 = vmatpush1.msra.mxu0 0.0
    %190 = vmatprep.subr.mxu0 0.0
    %191 = vmatpush1.msra.mxu0 0.0
    %192 = vmatprep.subr.mxu0 0.0
    %193 = vmatpush1.msra.mxu0 0.0
    %194 = vmatprep.subr.mxu0 0.0
    %195 = vmatpush1.msra.mxu0 0.0
    %196 = vmatprep.subr.mxu0 0.0
    %197 = vmatpush1.msra.mxu0 0.0
    %198 = vmatprep.subr.mxu0 0.0
    %199 = vmatpush1.msra.mxu0 0.0
    %200 = vmatprep.subr.mxu0 0.0
    %201 = vmatpush1.msra.mxu0 0.0
    %202 = vmatprep.subr.mxu0 0.0
    %203 = vmatpush1.msra.mxu0 0.0
    %204 = vmatprep.subr.mxu0 0.0
    %205 = vmatpush1.msra.mxu0 0.0
    %206 = vmatprep.mubr.f32.mxu0 0.0
    %207 = vmatmul.mubr.f32.gmra.mrb[0].mxu0 %v140
    %v208 = vpop.f32.mrb[0].mxu0
    %v209 = vadd.f32 %v136, %v208
    %v210 = vpop.f32.mrb[0].mxu0
    %211 = vdwg.mxu0
    %v212 = vld [vmem:[%s4] sm:$0x1]
    %v214 = vlaneseq
    %v215 = vshrl.u32 %v214, 7
    %v216 = vsub.s32 0, %v215
    %v217 = vrot.slane %v212, %v216
    %v219 = vadd.f32 %v209, %v217
    %v220 = vld [vmem:[%s5] sm:$0xff]
    %v221 = vld [vmem:[%s5 + $0x8] sm:$0xff]
    %v222 = vld [vmem:[%s5 + $0x10] sm:$0xff]
    %v223 = vld [vmem:[%s5 + $0x18] sm:$0xff]
    %v224 = vld [vmem:[%s6] sm:$0x1]
    %v226 = vlaneseq
    %v227 = vshrl.u32 %v226, 7
    %v228 = vsub.s32 0, %v227
    %v229 = vrot.slane %v224, %v228
    %vm231 = vcmask 261120
    %v233 = vsel %vm231, %v219, 0
    %235 = vmatprep.subr.mxu0 0.0
    %236 = vmatpush1.msra.mxu0 %v220
    %237 = vmatprep.subr.mxu0 0.0
    %238 = vmatpush1.msra.mxu0 %v221
    %239 = vmatprep.subr.mxu0 0.0
    %240 = vmatpush1.msra.mxu0 %v222
    %241 = vmatprep.subr.mxu0 0.0
    %242 = vmatpush1.msra.mxu0 %v223
    %243 = vmatprep.subr.mxu0 0.0
    %244 = vmatpush1.msra.mxu0 0.0
    %245 = vmatprep.subr.mxu0 0.0
    %246 = vmatpush1.msra.mxu0 0.0
    %247 = vmatprep.subr.mxu0 0.0
    %248 = vmatpush1.msra.mxu0 0.0
    %249 = vmatprep.subr.mxu0 0.0
    %250 = vmatpush1.msra.mxu0 0.0
    %251 = vmatprep.subr.mxu0 0.0
    %252 = vmatpush1.msra.mxu0 0.0
    %253 = vmatprep.subr.mxu0 0.0
    %254 = vmatpush1.msra.mxu0 0.0
    %255 = vmatprep.subr.mxu0 0.0
    %256 = vmatpush1.msra.mxu0 0.0
    %257 = vmatprep.subr.mxu0 0.0
    %258 = vmatpush1.msra.mxu0 0.0
    %259 = vmatprep.subr.mxu0 0.0
    %260 = vmatpush1.msra.mxu0 0.0
    %261 = vmatprep.subr.mxu0 0.0
    %262 = vmatpush1.msra.mxu0 0.0
    %263 = vmatprep.subr.mxu0 0.0
    %264 = vmatpush1.msra.mxu0 0.0
    %265 = vmatprep.subr.mxu0 0.0
    %266 = vmatpush1.msra.mxu0 0.0
    %267 = vmatprep.subr.mxu0 0.0
    %268 = vmatpush1.msra.mxu0 0.0
    %269 = vmatprep.subr.mxu0 0.0
    %270 = vmatpush1.msra.mxu0 0.0
    %271 = vmatprep.subr.mxu0 0.0
    %272 = vmatpush1.msra.mxu0 0.0
    %273 = vmatprep.subr.mxu0 0.0
    %274 = vmatpush1.msra.mxu0 0.0
    %275 = vmatprep.subr.mxu0 0.0
    %276 = vmatpush1.msra.mxu0 0.0
    %277 = vmatprep.subr.mxu0 0.0
    %278 = vmatpush1.msra.mxu0 0.0
    %279 = vmatprep.subr.mxu0 0.0
    %280 = vmatpush1.msra.mxu0 0.0
    %281 = vmatprep.subr.mxu0 0.0
    %282 = vmatpush1.msra.mxu0 0.0
    %283 = vmatprep.subr.mxu0 0.0
    %284 = vmatpush1.msra.mxu0 0.0
    %285 = vmatprep.subr.mxu0 0.0
    %286 = vmatpush1.msra.mxu0 0.0
    %287 = vmatprep.subr.mxu0 0.0
    %288 = vmatpush1.msra.mxu0 0.0
    %289 = vmatprep.subr.mxu0 0.0
    %290 = vmatpush1.msra.mxu0 0.0
    %291 = vmatprep.subr.mxu0 0.0
    %292 = vmatpush1.msra.mxu0 0.0
    %293 = vmatprep.subr.mxu0 0.0
    %294 = vmatpush1.msra.mxu0 0.0
    %295 = vmatprep.subr.mxu0 0.0
    %296 = vmatpush1.msra.mxu0 0.0
    %297 = vmatprep.subr.mxu0 0.0
    %298 = vmatpush1.msra.mxu0 0.0
    %299 = vmatprep.mubr.f32.mxu0 0.0
    %300 = vmatmul.mubr.f32.gmra.mrb[0].mxu0 %v233
    %v301 = vpop.f32.mrb[0].mxu0
    %v302 = vadd.f32 %v229, %v301
    %v303 = vpop.f32.mrb[0].mxu0
    %304 = vdwg.mxu0
    %v305 = vld [vmem:[%s7] sm:$0xff]
    %v306 = vld [vmem:[%s7 + $0x8] sm:$0xff]
    %v307 = vld [vmem:[%s7 + $0x10] sm:$0xff]
    %v308 = vld [vmem:[%s7 + $0x18] sm:$0xff]
    %v309 = vld [vmem:[%s8] sm:$0x1]
    %v311 = vlaneseq
    %v312 = vshrl.u32 %v311, 7
    %v313 = vsub.s32 0, %v312
    %v314 = vrot.slane %v309, %v313
    %v317 = vsel %vm231, %v302, 0
    %319 = vmatprep.subr.mxu0 0.0
    %320 = vmatpush1.msra.mxu0 %v305
    %321 = vmatprep.subr.mxu0 0.0
    %322 = vmatpush1.msra.mxu0 %v306
    %323 = vmatprep.subr.mxu0 0.0
    %324 = vmatpush1.msra.mxu0 %v307
    %325 = vmatprep.subr.mxu0 0.0
    %326 = vmatpush1.msra.mxu0 %v308
    %327 = vmatprep.subr.mxu0 0.0
    %328 = vmatpush1.msra.mxu0 0.0
    %329 = vmatprep.subr.mxu0 0.0
    %330 = vmatpush1.msra.mxu0 0.0
    %331 = vmatprep.subr.mxu0 0.0
    %332 = vmatpush1.msra.mxu0 0.0
    %333 = vmatprep.subr.mxu0 0.0
    %334 = vmatpush1.msra.mxu0 0.0
    %335 = vmatprep.subr.mxu0 0.0
    %336 = vmatpush1.msra.mxu0 0.0
    %337 = vmatprep.subr.mxu0 0.0
    %338 = vmatpush1.msra.mxu0 0.0
    %339 = vmatprep.subr.mxu0 0.0
    %340 = vmatpush1.msra.mxu0 0.0
    %341 = vmatprep.subr.mxu0 0.0
    %342 = vmatpush1.msra.mxu0 0.0
    %343 = vmatprep.subr.mxu0 0.0
    %344 = vmatpush1.msra.mxu0 0.0
    %345 = vmatprep.subr.mxu0 0.0
    %346 = vmatpush1.msra.mxu0 0.0
    %347 = vmatprep.subr.mxu0 0.0
    %348 = vmatpush1.msra.mxu0 0.0
    %349 = vmatprep.subr.mxu0 0.0
    %350 = vmatpush1.msra.mxu0 0.0
    %351 = vmatprep.subr.mxu0 0.0
    %352 = vmatpush1.msra.mxu0 0.0
    %353 = vmatprep.subr.mxu0 0.0
    %354 = vmatpush1.msra.mxu0 0.0
    %355 = vmatprep.subr.mxu0 0.0
    %356 = vmatpush1.msra.mxu0 0.0
    %357 = vmatprep.subr.mxu0 0.0
    %358 = vmatpush1.msra.mxu0 0.0
    %359 = vmatprep.subr.mxu0 0.0
    %360 = vmatpush1.msra.mxu0 0.0
    %361 = vmatprep.subr.mxu0 0.0
    %362 = vmatpush1.msra.mxu0 0.0
    %363 = vmatprep.subr.mxu0 0.0
    %364 = vmatpush1.msra.mxu0 0.0
    %365 = vmatprep.subr.mxu0 0.0
    %366 = vmatpush1.msra.mxu0 0.0
    %367 = vmatprep.subr.mxu0 0.0
    %368 = vmatpush1.msra.mxu0 0.0
    %369 = vmatprep.subr.mxu0 0.0
    %370 = vmatpush1.msra.mxu0 0.0
    %371 = vmatprep.subr.mxu0 0.0
    %372 = vmatpush1.msra.mxu0 0.0
    %373 = vmatprep.subr.mxu0 0.0
    %374 = vmatpush1.msra.mxu0 0.0
    %375 = vmatprep.subr.mxu0 0.0
    %376 = vmatpush1.msra.mxu0 0.0
    %377 = vmatprep.subr.mxu0 0.0
    %378 = vmatpush1.msra.mxu0 0.0
    %379 = vmatprep.subr.mxu0 0.0
    %380 = vmatpush1.msra.mxu0 0.0
    %381 = vmatprep.subr.mxu0 0.0
    %382 = vmatpush1.msra.mxu0 0.0
    %383 = vmatprep.mubr.f32.mxu0 0.0
    %384 = vmatmul.mubr.f32.gmra.mrb[0].mxu0 %v317
    %v385 = vpop.f32.mrb[0].mxu0
    %v386 = vadd.f32 %v314, %v385
    %v387 = vpop.f32.mrb[0].mxu0
    %388 = vdwg.mxu0
    %389 = vst.msk [vmem:[#allocation7] sm:$0xff] %vm65, %v386
    // Predicated region
    $region46: #{tpu_custom_call.1} parent=1 // pred_check
      _
    $region47: #{tpu_custom_call.1} parent=1 // pred_check_branch
      %391 = sbr.rel (0) target = $region49
    $region48: #{tpu_custom_call.1} parent=1 // pred_region
      %s393 = ssub.s32 128, 128
      %394 = vsyncadd [#allocation4], %s393
      %s396 = sshll.u32 [#allocation7], 4
      %s397 = int_to_ptr.vmem [resolvable:$true] %s396
      %399 = dma.vmem_to_hbm [thread:$0]  %s397, 128, %s9, [#allocation4]
    $region49: #{tpu_custom_call.1} parent=1 // pred_fallthru
      _
    // Predicated region
    $region50: #{tpu_custom_call.1} parent=1 // pred_check
      _
    $region51: #{tpu_custom_call.1} parent=1 // pred_check_branch
      %401 = sbr.rel (0) target = $region53
    $region52: #{tpu_custom_call.1} parent=1 // pred_region
      %402 = dma.done [#allocation4], 128
    $region53: #{tpu_custom_call.1} parent=1 // pred_fallthru
      _
    %403 = vsyncpa [#allocation3], 1
    %404 = vsyncpa [#allocation6], 1
    %405 = vsyncpa [#allocation4], 1

</llo_original>
